<compile_context>
chip_gen: v5e
topology: v5e:2x2
jax: 0.10.0
libtpu: 0.0.40
codegen_flags: <defaults>
</compile_context>

<pallas_src>
import jax
import jax.numpy as jnp
from jax.experimental import pallas as pl
from jax.experimental.pallas import tpu as pltpu

EPS = 1e-5

_VMEM = pl.BlockSpec(memory_space=pltpu.MemorySpace.VMEM)


# --------------------------------- fused kernel ---------------------------------
def _resblock_kernel(x_ref, w1_ref, w2_ref, p_ref, bn1_ref, bn2_ref, o_ref):
    """x_ref   : [H, N*W*C]     activations, lane-dense rows (also the residual)
       w*_ref  : [3, NWC, NWC]  banded conv weights (horizontal taps + horiz. SAME pad folded in)
       p_ref   : [NWC, NWC]     per-channel pool/broadcast matrix (includes 1/(N*H*W))
       bn*_ref : [3, NWC]       rows = (conv bias, BN gamma, BN beta), tiled across N*W
       o_ref   : [H, NWC]"""
    x = x_ref[...]
    p = p_ref[...]
    h, nwc = x.shape

    row = jax.lax.broadcasted_iota(jnp.int32, (h, nwc), 0)
    top_edge = row == 0          # no image row above
    bot_edge = row == h - 1      # no image row below

    def conv3x3(src, w_ref):
        # dy=0: contribution from the row ABOVE -> shift result down one row, zero row 0.
        acc = jnp.where(
            top_edge, 0.0,
            pltpu.roll(jnp.dot(src, w_ref[0], preferred_element_type=jnp.float32),
                       shift=1, axis=0))
        # dy=1: same row.
        acc = acc + jnp.dot(src, w_ref[1], preferred_element_type=jnp.float32)
        # dy=2: contribution from the row BELOW -> shift result up one row, zero last row.
        acc = acc + jnp.where(
            bot_edge, 0.0,
            pltpu.roll(jnp.dot(src, w_ref[2], preferred_element_type=jnp.float32),
                       shift=h - 1, axis=0))
        return acc

    def batchnorm(y, bn_ref):
        bn = bn_ref[...]
        y = y + bn[0:1, :]                                           # conv bias
        # One pooled matmul for both moments: rows = (sum y, sum y^2).
        s = jnp.concatenate([jnp.sum(y, axis=0, keepdims=True),
                             jnp.sum(y * y, axis=0, keepdims=True)], axis=0)
        stats = jnp.dot(s, p, preferred_element_type=jnp.float32)    # [2, NWC] per-channel E[y], E[y^2]
        mean = stats[0:1, :]
        var = jnp.maximum(stats[1:2, :] - mean * mean, 0.0)          # biased batch variance
        return (y - mean) * jax.lax.rsqrt(var + EPS) * bn[1:2, :] + bn[2:3, :]

    y = jnp.maximum(batchnorm(conv3x3(x, w1_ref), bn1_ref), 0.0)     # conv1 -> BN1 -> ReLU
    y = batchnorm(conv3x3(y, w2_ref), bn2_ref)                       # conv2 -> BN2
    o_ref[...] = jnp.maximum(x + y, 0.0)                             # residual + ReLU


# --------------------------------- constants (built once per weight set) ---------------------------------
def _band_weights(w_hwio, n, width):
    """[3, 3, Cin, Cout] -> [3, N*W*Cin, N*W*Cout] banded matrices (block-diag over N).
    band[dy][n*W*Cin + xi*Cin + c, n*W*Cout + xo*Cout + o] = w[dy, xi-xo+1, c, o]
    (zero for out-of-range taps = implicit horizontal SAME padding)."""
    cin, cout = w_hwio.shape[2], w_hwio.shape[3]
    eye_n = jnp.eye(n, dtype=jnp.float32)
    bands = []
    for dy in range(3):
        b = jnp.zeros((width * cin, width * cout), jnp.float32)
        for dx in range(3):
            shift = jnp.eye(width, k=1 - dx, dtype=jnp.float32)       # (xi, xo): xi = xo + dx - 1
            b = b + jnp.kron(shift, w_hwio[dy, dx].astype(jnp.float32))
        bands.append(jnp.kron(eye_n, b))
    return jnp.stack(bands)                                           # [3, N*W*Cin, N*W*Cout]


def prepare_resblock_constants(params, N, C, H, W):
    """Precompute all kernel constants once per weight set (hoisted out of the call path)."""
    w1, b1, g1, be1, w2, b2, g2, be2 = params
    w1b = _band_weights(w1, N, W)                                     # [3, NWC, NWC]
    w2b = _band_weights(w2, N, W)
    p = jnp.kron(jnp.ones((N * W, N * W), jnp.float32),
                 jnp.eye(C, dtype=jnp.float32)) / float(N * H * W)    # [NWC, NWC]
    bn1 = jnp.stack([jnp.tile(v.astype(jnp.float32).reshape(-1), N * W) for v in (b1, g1, be1)])
    bn2 = jnp.stack([jnp.tile(v.astype(jnp.float32).reshape(-1), N * W) for v in (b2, g2, be2)])
    return w1b, w2b, p, bn1, bn2


# --------------------------------- wrapper ---------------------------------
def resblock_pallas(x_nchw, consts):
    """ResBlock forward. x_nchw: [N, C, H, W] float32. Returns [N, C, H, W]."""
    w1b, w2b, p, bn1, bn2 = consts
    N, C, H, W = x_nchw.shape
    nwc = N * W * C

    # Layout conversion: NCHW -> lane-dense [H, N*W*C] slab (single XLA relayout).
    x = jnp.transpose(x_nchw, (2, 0, 3, 1)).reshape(H, nwc).astype(jnp.float32)

    cost = pl.CostEstimate(
        flops=2 * 3 * 2 * H * nwc * nwc + 2 * (2 * 2 * nwc * nwc + 10 * H * nwc),
        transcendentals=2 * nwc,
        bytes_accessed=4 * (2 * H * nwc + 7 * nwc * nwc + 6 * nwc),
    )

    out = pl.pallas_call(
        _resblock_kernel,
        out_shape=jax.ShapeDtypeStruct((H, nwc), jnp.float32),
        in_specs=[_VMEM] * 6,
        out_specs=_VMEM,
        compiler_params=pltpu.CompilerParams(vmem_limit_bytes=32 * 1024 * 1024),
        cost_estimate=cost,
    )(x, w1b, w2b, p, bn1, bn2)

    return jnp.transpose(out.reshape(H, N, W, C), (1, 3, 0, 2))       # -> NCHW


# ----------------------------- pure-JAX reference -----------------------------
def _ref_conv(x_nhwc, w_hwio, b):
    y = jax.lax.conv_general_dilated(
        x_nhwc, w_hwio, window_strides=(1, 1), padding="SAME",
        dimension_numbers=("NHWC", "HWIO", "NHWC"))
    return y + b.reshape(1, 1, 1, -1)


def _ref_bn(y, g, be):
    mean = jnp.mean(y, axis=(0, 1, 2), keepdims=True)
    var = jnp.mean((y - mean) ** 2, axis=(0, 1, 2), keepdims=True)
    return (y - mean) * jax.lax.rsqrt(var + EPS) * g.reshape(1, 1, 1, -1) + be.reshape(1, 1, 1, -1)


def resblock_ref(x_nchw, params):
    w1, b1, g1, be1, w2, b2, g2, be2 = params
    x = jnp.transpose(x_nchw, (0, 2, 3, 1)).astype(jnp.float32)
    y = jnp.maximum(_ref_bn(_ref_conv(x, w1, b1), g1, be1), 0.0)
    y = _ref_bn(_ref_conv(y, w2, b2), g2, be2)
    return jnp.transpose(jnp.maximum(x + y, 0.0), (0, 3, 1, 2))


# ----------------------------------- main -----------------------------------
if __name__ == "__main__":
    N, C, H, W = 2, 4, 16, 16            # in_channels == out_channels (residual add); N*W*C = 128 lanes
    key = jax.random.PRNGKey(0)
    ks = jax.random.split(key, 9)

    # Synthetic parameters: conv weights in HWIO [3, 3, Cin, Cout] (== torch weight.permute(2,3,1,0)).
    w1 = 0.1 * jax.random.normal(ks[0], (3, 3, C, C), jnp.float32)
    b1 = 0.1 * jax.random.normal(ks[1], (C,), jnp.float32)
    g1 = 1.0 + 0.1 * jax.random.normal(ks[2], (C,), jnp.float32)
    be1 = 0.1 * jax.random.normal(ks[3], (C,), jnp.float32)
    w2 = 0.1 * jax.random.normal(ks[4], (3, 3, C, C), jnp.float32)
    b2 = 0.1 * jax.random.normal(ks[5], (C,), jnp.float32)
    g2 = 1.0 + 0.1 * jax.random.normal(ks[6], (C,), jnp.float32)
    be2 = 0.1 * jax.random.normal(ks[7], (C,), jnp.float32)
    params = (w1, b1, g1, be1, w2, b2, g2, be2)

    x = jax.random.normal(ks[8], (N, C, H, W), jnp.float32)

    # Constants built once per weight set (hoisted out of the per-step call path).
    consts = jax.tree.map(jax.block_until_ready,
                          prepare_resblock_constants(params, N, C, H, W))

    fwd = jax.jit(resblock_pallas)
    out = jax.block_until_ready(fwd(x, consts))
    ref = jax.block_until_ready(resblock_ref(x, params))

    assert out.shape == (N, C, H, W)
    err = jnp.max(jnp.abs(out - ref))
    # Tolerance deliberately at 2e-3: BN variance uses the pooled E[y^2]-E[y]^2 form (one matmul).
    assert jnp.allclose(out, ref, atol=2e-3, rtol=2e-3), f"max abs diff {err}"
    print("KERNEL_OK")
</pallas_src>

<mosaic_0001>
module attributes {stable_mosaic.version = 11 : i64} {
  func.func @_resblock_kernel(%arg0: memref<16x128xf32, #tpu.memory_space<vmem>>, %arg1: memref<3x128x128xf32, #tpu.memory_space<vmem>>, %arg2: memref<3x128x128xf32, #tpu.memory_space<vmem>>, %arg3: memref<128x128xf32, #tpu.memory_space<vmem>>, %arg4: memref<3x128xf32, #tpu.memory_space<vmem>>, %arg5: memref<3x128xf32, #tpu.memory_space<vmem>>, %arg6: memref<16x128xf32, #tpu.memory_space<vmem>>) attributes {dimension_semantics = [], scalar_prefetch = 0 : i64, scratch_operands = 0 : i64, tpu.core_type = #tpu.core_type<tc>} {
    %c0 = arith.constant 0 : index
    %c0_0 = arith.constant 0 : index
    %0 = vector.load %arg0[%c0, %c0_0] : memref<16x128xf32, #tpu.memory_space<vmem>>, vector<16x128xf32>
    %c0_1 = arith.constant 0 : index
    %c0_2 = arith.constant 0 : index
    %1 = vector.load %arg3[%c0_1, %c0_2] : memref<128x128xf32, #tpu.memory_space<vmem>>, vector<128x128xf32>
    %2 = tpu.iota {dimensions = array<i32: 0>} : vector<16x128xi32>
    %c0_i32 = arith.constant 0 : i32
    %3 = vector.broadcast %c0_i32 : i32 to vector<16x128xi32>
    %4 = arith.cmpi eq, %2, %3 : vector<16x128xi32>
    %c15_i32 = arith.constant 15 : i32
    %5 = vector.broadcast %c15_i32 : i32 to vector<16x128xi32>
    %6 = arith.cmpi eq, %2, %5 : vector<16x128xi32>
    %c0_3 = arith.constant 0 : index
    %c0_4 = arith.constant 0 : index
    %c0_5 = arith.constant 0 : index
    %7 = vector.load %arg1[%c0_3, %c0_4, %c0_5] : memref<3x128x128xf32, #tpu.memory_space<vmem>>, vector<1x128x128xf32>
    %8 = vector.shape_cast %7 : vector<1x128x128xf32> to vector<128x128xf32>
    %cst = arith.constant dense<0.000000e+00> : vector<16x128xf32>
    %9 = tpu.matmul %0, %8, %cst {dimension_numbers = #tpu.dot_dimension_numbers<[1], [0], [0], [1], [0, 0, 1, 1], [], []>} : vector<16x128xf32>, vector<128x128xf32>, vector<16x128xf32> -> vector<16x128xf32>
    %c1_i32 = arith.constant 1 : i32
    %10 = tpu.dynamic_rotate %9 by %c1_i32 dim 0 : vector<16x128xf32>, i32 -> vector<16x128xf32>
    %cst_6 = arith.constant 0.000000e+00 : f32
    %11 = vector.broadcast %cst_6 : f32 to vector<16x128xf32>
    %12 = arith.select %4, %11, %10 : vector<16x128xi1>, vector<16x128xf32>
    %c1 = arith.constant 1 : index
    %c0_7 = arith.constant 0 : index
    %c0_8 = arith.constant 0 : index
    %13 = vector.load %arg1[%c1, %c0_7, %c0_8] : memref<3x128x128xf32, #tpu.memory_space<vmem>>, vector<1x128x128xf32>
    %14 = vector.shape_cast %13 : vector<1x128x128xf32> to vector<128x128xf32>
    %cst_9 = arith.constant dense<0.000000e+00> : vector<16x128xf32>
    %15 = tpu.matmul %0, %14, %cst_9 {dimension_numbers = #tpu.dot_dimension_numbers<[1], [0], [0], [1], [0, 0, 1, 1], [], []>} : vector<16x128xf32>, vector<128x128xf32>, vector<16x128xf32> -> vector<16x128xf32>
    %16 = arith.addf %12, %15 : vector<16x128xf32>
    %c2 = arith.constant 2 : index
    %c0_10 = arith.constant 0 : index
    %c0_11 = arith.constant 0 : index
    %17 = vector.load %arg1[%c2, %c0_10, %c0_11] : memref<3x128x128xf32, #tpu.memory_space<vmem>>, vector<1x128x128xf32>
    %18 = vector.shape_cast %17 : vector<1x128x128xf32> to vector<128x128xf32>
    %cst_12 = arith.constant dense<0.000000e+00> : vector<16x128xf32>
    %19 = tpu.matmul %0, %18, %cst_12 {dimension_numbers = #tpu.dot_dimension_numbers<[1], [0], [0], [1], [0, 0, 1, 1], [], []>} : vector<16x128xf32>, vector<128x128xf32>, vector<16x128xf32> -> vector<16x128xf32>
    %c15_i32_13 = arith.constant 15 : i32
    %20 = tpu.dynamic_rotate %19 by %c15_i32_13 dim 0 : vector<16x128xf32>, i32 -> vector<16x128xf32>
    %cst_14 = arith.constant 0.000000e+00 : f32
    %21 = vector.broadcast %cst_14 : f32 to vector<16x128xf32>
    %22 = arith.select %6, %21, %20 : vector<16x128xi1>, vector<16x128xf32>
    %23 = arith.addf %16, %22 : vector<16x128xf32>
    %c0_15 = arith.constant 0 : index
    %c0_16 = arith.constant 0 : index
    %24 = vector.load %arg4[%c0_15, %c0_16] : memref<3x128xf32, #tpu.memory_space<vmem>>, vector<3x128xf32>
    %25 = vector.extract_strided_slice %24 {offsets = [0, 0], sizes = [1, 128], strides = [1, 1]} : vector<3x128xf32> to vector<1x128xf32>
    %26 = vector.broadcast %25 : vector<1x128xf32> to vector<16x128xf32>
    %27 = arith.addf %23, %26 : vector<16x128xf32>
    %cst_17 = arith.constant dense<0.000000e+00> : vector<128xf32>
    %28 = vector.multi_reduction <add>, %27, %cst_17 [0] : vector<16x128xf32> to vector<128xf32>
    %29 = vector.shape_cast %28 : vector<128xf32> to vector<1x128xf32>
    %30 = arith.mulf %27, %27 : vector<16x128xf32>
    %cst_18 = arith.constant dense<0.000000e+00> : vector<128xf32>
    %31 = vector.multi_reduction <add>, %30, %cst_18 [0] : vector<16x128xf32> to vector<128xf32>
    %32 = vector.shape_cast %31 : vector<128xf32> to vector<1x128xf32>
    %33 = tpu.concatenate %29, %32 in 0 : vector<1x128xf32>, vector<1x128xf32> -> vector<2x128xf32>
    %cst_19 = arith.constant dense<0.000000e+00> : vector<2x128xf32>
    %34 = tpu.matmul %33, %1, %cst_19 {dimension_numbers = #tpu.dot_dimension_numbers<[1], [0], [0], [1], [0, 0, 1, 1], [], []>} : vector<2x128xf32>, vector<128x128xf32>, vector<2x128xf32> -> vector<2x128xf32>
    %35 = vector.extract_strided_slice %34 {offsets = [0, 0], sizes = [1, 128], strides = [1, 1]} : vector<2x128xf32> to vector<1x128xf32>
    %36 = vector.extract_strided_slice %34 {offsets = [1, 0], sizes = [1, 128], strides = [1, 1]} : vector<2x128xf32> to vector<1x128xf32>
    %37 = arith.mulf %35, %35 : vector<1x128xf32>
    %38 = arith.subf %36, %37 : vector<1x128xf32>
    %cst_20 = arith.constant 0.000000e+00 : f32
    %39 = vector.broadcast %cst_20 : f32 to vector<1x128xf32>
    %40 = arith.maximumf %38, %39 : vector<1x128xf32>
    %41 = vector.broadcast %35 : vector<1x128xf32> to vector<16x128xf32>
    %42 = arith.subf %27, %41 : vector<16x128xf32>
    %cst_21 = arith.constant 9.99999974E-6 : f32
    %43 = vector.broadcast %cst_21 : f32 to vector<1x128xf32>
    %44 = arith.addf %40, %43 : vector<1x128xf32>
    %45 = math.rsqrt %44 : vector<1x128xf32>
    %46 = vector.broadcast %45 : vector<1x128xf32> to vector<16x128xf32>
    %47 = arith.mulf %42, %46 : vector<16x128xf32>
    %48 = vector.extract_strided_slice %24 {offsets = [1, 0], sizes = [1, 128], strides = [1, 1]} : vector<3x128xf32> to vector<1x128xf32>
    %49 = vector.broadcast %48 : vector<1x128xf32> to vector<16x128xf32>
    %50 = arith.mulf %47, %49 : vector<16x128xf32>
    %51 = vector.extract_strided_slice %24 {offsets = [2, 0], sizes = [1, 128], strides = [1, 1]} : vector<3x128xf32> to vector<1x128xf32>
    %52 = vector.broadcast %51 : vector<1x128xf32> to vector<16x128xf32>
    %53 = arith.addf %50, %52 : vector<16x128xf32>
    %cst_22 = arith.constant 0.000000e+00 : f32
    %54 = vector.broadcast %cst_22 : f32 to vector<16x128xf32>
    %55 = arith.maximumf %53, %54 : vector<16x128xf32>
    %c0_23 = arith.constant 0 : index
    %c0_24 = arith.constant 0 : index
    %c0_25 = arith.constant 0 : index
    %56 = vector.load %arg2[%c0_23, %c0_24, %c0_25] : memref<3x128x128xf32, #tpu.memory_space<vmem>>, vector<1x128x128xf32>
    %57 = vector.shape_cast %56 : vector<1x128x128xf32> to vector<128x128xf32>
    %cst_26 = arith.constant dense<0.000000e+00> : vector<16x128xf32>
    %58 = tpu.matmul %55, %57, %cst_26 {dimension_numbers = #tpu.dot_dimension_numbers<[1], [0], [0], [1], [0, 0, 1, 1], [], []>} : vector<16x128xf32>, vector<128x128xf32>, vector<16x128xf32> -> vector<16x128xf32>
    %c1_i32_27 = arith.constant 1 : i32
    %59 = tpu.dynamic_rotate %58 by %c1_i32_27 dim 0 : vector<16x128xf32>, i32 -> vector<16x128xf32>
    %cst_28 = arith.constant 0.000000e+00 : f32
    %60 = vector.broadcast %cst_28 : f32 to vector<16x128xf32>
    %61 = arith.select %4, %60, %59 : vector<16x128xi1>, vector<16x128xf32>
    %c1_29 = arith.constant 1 : index
    %c0_30 = arith.constant 0 : index
    %c0_31 = arith.constant 0 : index
    %62 = vector.load %arg2[%c1_29, %c0_30, %c0_31] : memref<3x128x128xf32, #tpu.memory_space<vmem>>, vector<1x128x128xf32>
    %63 = vector.shape_cast %62 : vector<1x128x128xf32> to vector<128x128xf32>
    %cst_32 = arith.constant dense<0.000000e+00> : vector<16x128xf32>
    %64 = tpu.matmul %55, %63, %cst_32 {dimension_numbers = #tpu.dot_dimension_numbers<[1], [0], [0], [1], [0, 0, 1, 1], [], []>} : vector<16x128xf32>, vector<128x128xf32>, vector<16x128xf32> -> vector<16x128xf32>
    %65 = arith.addf %61, %64 : vector<16x128xf32>
    %c2_33 = arith.constant 2 : index
    %c0_34 = arith.constant 0 : index
    %c0_35 = arith.constant 0 : index
    %66 = vector.load %arg2[%c2_33, %c0_34, %c0_35] : memref<3x128x128xf32, #tpu.memory_space<vmem>>, vector<1x128x128xf32>
    %67 = vector.shape_cast %66 : vector<1x128x128xf32> to vector<128x128xf32>
    %cst_36 = arith.constant dense<0.000000e+00> : vector<16x128xf32>
    %68 = tpu.matmul %55, %67, %cst_36 {dimension_numbers = #tpu.dot_dimension_numbers<[1], [0], [0], [1], [0, 0, 1, 1], [], []>} : vector<16x128xf32>, vector<128x128xf32>, vector<16x128xf32> -> vector<16x128xf32>
    %c15_i32_37 = arith.constant 15 : i32
    %69 = tpu.dynamic_rotate %68 by %c15_i32_37 dim 0 : vector<16x128xf32>, i32 -> vector<16x128xf32>
    %cst_38 = arith.constant 0.000000e+00 : f32
    %70 = vector.broadcast %cst_38 : f32 to vector<16x128xf32>
    %71 = arith.select %6, %70, %69 : vector<16x128xi1>, vector<16x128xf32>
    %72 = arith.addf %65, %71 : vector<16x128xf32>
    %c0_39 = arith.constant 0 : index
    %c0_40 = arith.constant 0 : index
    %73 = vector.load %arg5[%c0_39, %c0_40] : memref<3x128xf32, #tpu.memory_space<vmem>>, vector<3x128xf32>
    %74 = vector.extract_strided_slice %73 {offsets = [0, 0], sizes = [1, 128], strides = [1, 1]} : vector<3x128xf32> to vector<1x128xf32>
    %75 = vector.broadcast %74 : vector<1x128xf32> to vector<16x128xf32>
    %76 = arith.addf %72, %75 : vector<16x128xf32>
    %cst_41 = arith.constant dense<0.000000e+00> : vector<128xf32>
    %77 = vector.multi_reduction <add>, %76, %cst_41 [0] : vector<16x128xf32> to vector<128xf32>
    %78 = vector.shape_cast %77 : vector<128xf32> to vector<1x128xf32>
    %79 = arith.mulf %76, %76 : vector<16x128xf32>
    %cst_42 = arith.constant dense<0.000000e+00> : vector<128xf32>
    %80 = vector.multi_reduction <add>, %79, %cst_42 [0] : vector<16x128xf32> to vector<128xf32>
    %81 = vector.shape_cast %80 : vector<128xf32> to vector<1x128xf32>
    %82 = tpu.concatenate %78, %81 in 0 : vector<1x128xf32>, vector<1x128xf32> -> vector<2x128xf32>
    %cst_43 = arith.constant dense<0.000000e+00> : vector<2x128xf32>
    %83 = tpu.matmul %82, %1, %cst_43 {dimension_numbers = #tpu.dot_dimension_numbers<[1], [0], [0], [1], [0, 0, 1, 1], [], []>} : vector<2x128xf32>, vector<128x128xf32>, vector<2x128xf32> -> vector<2x128xf32>
    %84 = vector.extract_strided_slice %83 {offsets = [0, 0], sizes = [1, 128], strides = [1, 1]} : vector<2x128xf32> to vector<1x128xf32>
    %85 = vector.extract_strided_slice %83 {offsets = [1, 0], sizes = [1, 128], strides = [1, 1]} : vector<2x128xf32> to vector<1x128xf32>
    %86 = arith.mulf %84, %84 : vector<1x128xf32>
    %87 = arith.subf %85, %86 : vector<1x128xf32>
    %cst_44 = arith.constant 0.000000e+00 : f32
    %88 = vector.broadcast %cst_44 : f32 to vector<1x128xf32>
    %89 = arith.maximumf %87, %88 : vector<1x128xf32>
    %90 = vector.broadcast %84 : vector<1x128xf32> to vector<16x128xf32>
    %91 = arith.subf %76, %90 : vector<16x128xf32>
    %cst_45 = arith.constant 9.99999974E-6 : f32
    %92 = vector.broadcast %cst_45 : f32 to vector<1x128xf32>
    %93 = arith.addf %89, %92 : vector<1x128xf32>
    %94 = math.rsqrt %93 : vector<1x128xf32>
    %95 = vector.broadcast %94 : vector<1x128xf32> to vector<16x128xf32>
    %96 = arith.mulf %91, %95 : vector<16x128xf32>
    %97 = vector.extract_strided_slice %73 {offsets = [1, 0], sizes = [1, 128], strides = [1, 1]} : vector<3x128xf32> to vector<1x128xf32>
    %98 = vector.broadcast %97 : vector<1x128xf32> to vector<16x128xf32>
    %99 = arith.mulf %96, %98 : vector<16x128xf32>
    %100 = vector.extract_strided_slice %73 {offsets = [2, 0], sizes = [1, 128], strides = [1, 1]} : vector<3x128xf32> to vector<1x128xf32>
    %101 = vector.broadcast %100 : vector<1x128xf32> to vector<16x128xf32>
    %102 = arith.addf %99, %101 : vector<16x128xf32>
    %103 = arith.addf %0, %102 : vector<16x128xf32>
    %cst_46 = arith.constant 0.000000e+00 : f32
    %104 = vector.broadcast %cst_46 : f32 to vector<16x128xf32>
    %105 = arith.maximumf %103, %104 : vector<16x128xf32>
    %c0_47 = arith.constant 0 : index
    %c0_48 = arith.constant 0 : index
    %106 = vector.load %arg6[%c0_47, %c0_48] : memref<16x128xf32, #tpu.memory_space<vmem>>, vector<16x128xf32>
    tpu.vector_store %arg6[%c0_47, %c0_48], %105 {strides = array<i32>} : memref<16x128xf32, #tpu.memory_space<vmem>>, vector<16x128xf32>,
    return
  }
}

</mosaic_0001>

<llo_original>
// kernel: resblock_pallas.1
$region0: #{resblock_pallas.1}
  #allocation0 [shape = 'u32[]', space=smem, size = 0x4, offset = 0x4, fixed_abs, tag = 'smem constant byte address 0x4 - core index']
  #allocation1 [shape = 'u32[72,128]{1,0:T(1,128)}', space=vmem, size = 0x9000, scoped, tag = 'internal scratch']
  %s0 = inlined_call_operand.vmem [shape: f32[16,128], index: 0, kind: input, shape index: {}]
  %s1 = inlined_call_operand.vmem [shape: f32[3,128,128], index: 1, kind: input, shape index: {}]
  %s2 = inlined_call_operand.hbm [shape: f32[3,128,128], index: 2, kind: input, shape index: {}]
  %s3 = inlined_call_operand.hbm [shape: f32[128,128], index: 3, kind: input, shape index: {}]
  %s4 = inlined_call_operand.vmem [shape: f32[3,128], index: 4, kind: input, shape index: {}]
  %s5 = inlined_call_operand.vmem [shape: f32[3,128], index: 5, kind: input, shape index: {}]
  %s6 = inlined_call_operand.vmem [shape: f32[16,128], index: 6, kind: output, shape index: {}]
  %s7 = sld [smem:[#allocation0]]
  $region42: #{resblock_pallas.1} parent=0
    _
  %s9 = ssub.s32 1, %s7
  %s10 = scalar_select 0, %s9, %s7
  $region1: #{resblock_pallas.1} parent=0
    #allocation2 [shape = 'u8[196608]{0}', space=vmem, size = 0x30000, scoped, tag = 'input window, operand 2, single buffered']
    #allocation3 [shape = 's32[1]{0}', space=sflag, size = 0x4, scoped, tag = 'scoped memory for resblock_pallas.1']
    #allocation4 [shape = 'u8[65536]{0}', space=vmem, size = 0x10000, scoped, tag = 'input window, operand 3, single buffered']
    #allocation5 [shape = 's32[1]{0}', space=sflag, size = 0x4, scoped, tag = 'scoped memory for resblock_pallas.1']
    %11 = vsyncpa [#allocation3], 0
    %12 = vsyncpa [#allocation5], 0
    // Predicated region
    $region2: #{resblock_pallas.1} parent=1 // pred_check
      _
    $region3: #{resblock_pallas.1} parent=1 // pred_check_branch
      %14 = sbr.rel (0) target = $region5
    $region4: #{resblock_pallas.1} parent=1 // pred_region
      _
    $region5: #{resblock_pallas.1} parent=1 // pred_fallthru
      _
    // Predicated region
    $region6: #{resblock_pallas.1} parent=1 // pred_check
      _
    $region7: #{resblock_pallas.1} parent=1 // pred_check_branch
      %16 = sbr.rel (0) target = $region9
    $region8: #{resblock_pallas.1} parent=1 // pred_region
      _
    $region9: #{resblock_pallas.1} parent=1 // pred_fallthru
      _
    // Predicated region
    $region10: #{resblock_pallas.1} parent=1 // pred_check
      _
    $region11: #{resblock_pallas.1} parent=1 // pred_check_branch
      %18 = sbr.rel (0) target = $region13
    $region12: #{resblock_pallas.1} parent=1 // pred_region
      %20 = vsyncadd [#allocation3], 0
      %s21 = sshll.u32 %s2, 4
      %s22 = int_to_ptr.hbm [resolvable:$true] %s21
      %s23 = sshll.u32 [#allocation2], 4
      %s24 = int_to_ptr.vmem [resolvable:$true] %s23
      %29 = dma.hbm_to_vmem [thread:$0]  %s22, 6144, %s24, [#allocation3], 128, 128, 8
    $region13: #{resblock_pallas.1} parent=1 // pred_fallthru
      _
    // Predicated region
    $region14: #{resblock_pallas.1} parent=1 // pred_check
      _
    $region15: #{resblock_pallas.1} parent=1 // pred_check_branch
      %31 = sbr.rel (0) target = $region17
    $region16: #{resblock_pallas.1} parent=1 // pred_region
      %33 = vsyncadd [#allocation5], 0
      %s34 = sshll.u32 %s3, 4
      %s35 = int_to_ptr.hbm [resolvable:$true] %s34
      %s36 = sshll.u32 [#allocation4], 4
      %s37 = int_to_ptr.vmem [resolvable:$true] %s36
      %42 = dma.hbm_to_vmem [thread:$0]  %s35, 2048, %s37, [#allocation5], 128, 128, 8
    $region17: #{resblock_pallas.1} parent=1 // pred_fallthru
      _
    // Predicated region
    $region18: #{resblock_pallas.1} parent=1 // pred_check
      _
    $region19: #{resblock_pallas.1} parent=1 // pred_check_branch
      %44 = sbr.rel (0) target = $region21
    $region20: #{resblock_pallas.1} parent=1 // pred_region
      _
    $region21: #{resblock_pallas.1} parent=1 // pred_fallthru
      _
    // Predicated region
    $region22: #{resblock_pallas.1} parent=1 // pred_check
      _
    $region23: #{resblock_pallas.1} parent=1 // pred_check_branch
      %46 = sbr.rel (0) target = $region25
    $region24: #{resblock_pallas.1} parent=1 // pred_region
      _
    $region25: #{resblock_pallas.1} parent=1 // pred_fallthru
      _
    // Predicated region
    $region26: #{resblock_pallas.1} parent=1 // pred_check
      _
    $region27: #{resblock_pallas.1} parent=1 // pred_check_branch
      %48 = sbr.rel (0) target = $region29
    $region28: #{resblock_pallas.1} parent=1 // pred_region
      %50 = dma.done [#allocation3], 6144
    $region29: #{resblock_pallas.1} parent=1 // pred_fallthru
      _
    // Predicated region
    $region30: #{resblock_pallas.1} parent=1 // pred_check
      _
    $region31: #{resblock_pallas.1} parent=1 // pred_check_branch
      %52 = sbr.rel (0) target = $region33
    $region32: #{resblock_pallas.1} parent=1 // pred_region
      %54 = dma.done [#allocation5], 2048
    $region33: #{resblock_pallas.1} parent=1 // pred_fallthru
      _
    %v55 = vld [vmem:[%s0] sm:$0xff]
    %v56 = vld [vmem:[%s0 + $0x8] sm:$0xff]
    %v57 = vld [vmem:[#allocation4] sm:$0xff]
    %v58 = vld [vmem:[#allocation4 + $0x8] sm:$0xff]
    %v59 = vld [vmem:[#allocation4 + $0x10] sm:$0xff]
    %v60 = vld [vmem:[#allocation4 + $0x18] sm:$0xff]
    %v61 = vld [vmem:[#allocation4 + $0x20] sm:$0xff]
    %v62 = vld [vmem:[#allocation4 + $0x28] sm:$0xff]
    %v63 = vld [vmem:[#allocation4 + $0x30] sm:$0xff]
    %v64 = vld [vmem:[#allocation4 + $0x38] sm:$0xff]
    %v65 = vld [vmem:[#allocation4 + $0x40] sm:$0xff]
    %v66 = vld [vmem:[#allocation4 + $0x48] sm:$0xff]
    %v67 = vld [vmem:[#allocation4 + $0x50] sm:$0xff]
    %v68 = vld [vmem:[#allocation4 + $0x58] sm:$0xff]
    %v69 = vld [vmem:[#allocation4 + $0x60] sm:$0xff]
    %v70 = vld [vmem:[#allocation4 + $0x68] sm:$0xff]
    %v71 = vld [vmem:[#allocation4 + $0x70] sm:$0xff]
    %v72 = vld [vmem:[#allocation4 + $0x78] sm:$0xff]
    %v73 = vlaneseq
    %v74 = vshrl.u32 %v73, 7
    %v75 = vadd.s32 %v74, 8
    %vm76 = vcmp.eq.s32.totalorder %v74, 0
    %vm77 = vcmp.eq.s32.totalorder %v75, 0
    %vm78 = vcmp.eq.s32.totalorder %v74, 15
    %vm79 = vcmp.eq.s32.totalorder %v75, 15
    %v80 = vld [vmem:[%s1] sm:$0xff]
    %v81 = vld [vmem:[%s1 + $0x8] sm:$0xff]
    %v82 = vld [vmem:[%s1 + $0x10] sm:$0xff]
    %v83 = vld [vmem:[%s1 + $0x18] sm:$0xff]
    %v84 = vld [vmem:[%s1 + $0x20] sm:$0xff]
    %v85 = vld [vmem:[%s1 + $0x28] sm:$0xff]
    %v86 = vld [vmem:[%s1 + $0x30] sm:$0xff]
    %v87 = vld [vmem:[%s1 + $0x38] sm:$0xff]
    %v88 = vld [vmem:[%s1 + $0x40] sm:$0xff]
    %v89 = vld [vmem:[%s1 + $0x48] sm:$0xff]
    %v90 = vld [vmem:[%s1 + $0x50] sm:$0xff]
    %v91 = vld [vmem:[%s1 + $0x58] sm:$0xff]
    %v92 = vld [vmem:[%s1 + $0x60] sm:$0xff]
    %v93 = vld [vmem:[%s1 + $0x68] sm:$0xff]
    %v94 = vld [vmem:[%s1 + $0x70] sm:$0xff]
    %v95 = vld [vmem:[%s1 + $0x78] sm:$0xff]
    %96 = vmatpush.msra.mxu0 %v95
    %97 = vmatpush.msra.mxu0 %v94
    %98 = vmatpush.msra.mxu0 %v93
    %99 = vmatpush.msra.mxu0 %v92
    %100 = vmatpush.msra.mxu0 %v91
    %101 = vmatpush.msra.mxu0 %v90
    %102 = vmatpush.msra.mxu0 %v89
    %103 = vmatpush.msra.mxu0 %v88
    %104 = vmatpush.msra.mxu0 %v87
    %105 = vmatpush.msra.mxu0 %v86
    %106 = vmatpush.msra.mxu0 %v85
    %107 = vmatpush.msra.mxu0 %v84
    %108 = vmatpush.msra.mxu0 %v83
    %109 = vmatpush.msra.mxu0 %v82
    %110 = vmatpush.msra.mxu0 %v81
    %111 = vmatpush.msra.mxu0 %v80
    %112 = vmatmul.f32.gmra.mxu0 %v55
    %v113 = vpop.f32.mrf.mxu0
    %v114 = vadd.f32 0.0, %v113
    %115 = vmatmul.f32.gmra.mxu0 %v56
    %v116 = vpop.f32.mrf.mxu0
    %v117 = vadd.f32 0.0, %v116
    %118 = vdwg.mxu0
    %v119 = vrot.slane %v114, 7
    %v120 = vrot.slane %v117, 7
    %vm121 = vcmp.lt.s32.totalorder %v74, 1
    %v122 = vsel %vm121, %v119, %v120
    %v123 = vsel %vm121, %v120, %v119
    %v124 = vsel %vm76, 0.0, %v123
    %v125 = vsel %vm77, 0.0, %v122
    %s126 = scalar_lea.vmem %s1, 128
    %v127 = vld [vmem:[%s126] sm:$0xff]
    %v128 = vld [vmem:[%s126 + $0x8] sm:$0xff]
    %v129 = vld [vmem:[%s126 + $0x10] sm:$0xff]
    %v130 = vld [vmem:[%s126 + $0x18] sm:$0xff]
    %v131 = vld [vmem:[%s126 + $0x20] sm:$0xff]
    %v132 = vld [vmem:[%s126 + $0x28] sm:$0xff]
    %v133 = vld [vmem:[%s126 + $0x30] sm:$0xff]
    %v134 = vld [vmem:[%s126 + $0x38] sm:$0xff]
    %v135 = vld [vmem:[%s126 + $0x40] sm:$0xff]
    %v136 = vld [vmem:[%s126 + $0x48] sm:$0xff]
    %v137 = vld [vmem:[%s126 + $0x50] sm:$0xff]
    %v138 = vld [vmem:[%s126 + $0x58] sm:$0xff]
    %v139 = vld [vmem:[%s126 + $0x60] sm:$0xff]
    %v140 = vld [vmem:[%s126 + $0x68] sm:$0xff]
    %v141 = vld [vmem:[%s126 + $0x70] sm:$0xff]
    %v142 = vld [vmem:[%s126 + $0x78] sm:$0xff]
    %143 = vmatpush.msra.mxu0 %v142
    %144 = vmatpush.msra.mxu0 %v141
    %145 = vmatpush.msra.mxu0 %v140
    %146 = vmatpush.msra.mxu0 %v139
    %147 = vmatpush.msra.mxu0 %v138
    %148 = vmatpush.msra.mxu0 %v137
    %149 = vmatpush.msra.mxu0 %v136
    %150 = vmatpush.msra.mxu0 %v135
    %151 = vmatpush.msra.mxu0 %v134
    %152 = vmatpush.msra.mxu0 %v133
    %153 = vmatpush.msra.mxu0 %v132
    %154 = vmatpush.msra.mxu0 %v131
    %155 = vmatpush.msra.mxu0 %v130
    %156 = vmatpush.msra.mxu0 %v129
    %157 = vmatpush.msra.mxu0 %v128
    %158 = vmatpush.msra.mxu0 %v127
    %159 = vmatmul.f32.gmra.mxu0 %v55
    %v160 = vpop.f32.mrf.mxu0
    %v161 = vadd.f32 0.0, %v160
    %162 = vmatmul.f32.gmra.mxu0 %v56
    %v163 = vpop.f32.mrf.mxu0
    %v164 = vadd.f32 0.0, %v163
    %165 = vdwg.mxu0
    %v166 = vadd.f32 %v124, %v161
    %v167 = vadd.f32 %v125, %v164
    %s168 = scalar_lea.vmem %s1, 256
    %v169 = vld [vmem:[%s168] sm:$0xff]
    %v170 = vld [vmem:[%s168 + $0x8] sm:$0xff]
    %v171 = vld [vmem:[%s168 + $0x10] sm:$0xff]
    %v172 = vld [vmem:[%s168 + $0x18] sm:$0xff]
    %v173 = vld [vmem:[%s168 + $0x20] sm:$0xff]
    %v174 = vld [vmem:[%s168 + $0x28] sm:$0xff]
    %v175 = vld [vmem:[%s168 + $0x30] sm:$0xff]
    %v176 = vld [vmem:[%s168 + $0x38] sm:$0xff]
    %v177 = vld [vmem:[%s168 + $0x40] sm:$0xff]
    %v178 = vld [vmem:[%s168 + $0x48] sm:$0xff]
    %v179 = vld [vmem:[%s168 + $0x50] sm:$0xff]
    %v180 = vld [vmem:[%s168 + $0x58] sm:$0xff]
    %v181 = vld [vmem:[%s168 + $0x60] sm:$0xff]
    %v182 = vld [vmem:[%s168 + $0x68] sm:$0xff]
    %v183 = vld [vmem:[%s168 + $0x70] sm:$0xff]
    %v184 = vld [vmem:[%s168 + $0x78] sm:$0xff]
    %185 = vmatpush.msra.mxu0 %v184
    %186 = vmatpush.msra.mxu0 %v183
    %187 = vmatpush.msra.mxu0 %v182
    %188 = vmatpush.msra.mxu0 %v181
    %189 = vmatpush.msra.mxu0 %v180
    %190 = vmatpush.msra.mxu0 %v179
    %191 = vmatpush.msra.mxu0 %v178
    %192 = vmatpush.msra.mxu0 %v177
    %193 = vmatpush.msra.mxu0 %v176
    %194 = vmatpush.msra.mxu0 %v175
    %195 = vmatpush.msra.mxu0 %v174
    %196 = vmatpush.msra.mxu0 %v173
    %197 = vmatpush.msra.mxu0 %v172
    %198 = vmatpush.msra.mxu0 %v171
    %199 = vmatpush.msra.mxu0 %v170
    %200 = vmatpush.msra.mxu0 %v169
    %201 = vmatmul.f32.gmra.mxu0 %v55
    %v202 = vpop.f32.mrf.mxu0
    %v203 = vadd.f32 0.0, %v202
    %204 = vmatmul.f32.gmra.mxu0 %v56
    %v205 = vpop.f32.mrf.mxu0
    %v206 = vadd.f32 0.0, %v205
    %207 = vdwg.mxu0
    %v208 = vrot.slane %v203, 1
    %v209 = vrot.slane %v206, 1
    %vm210 = vcmp.lt.s32.totalorder %v74, 7
    %v211 = vsel %vm210, %v208, %v209
    %v212 = vsel %vm210, %v209, %v208
    %v213 = vsel %vm78, 0.0, %v211
    %v214 = vsel %vm79, 0.0, %v212
    %v215 = vadd.f32 %v166, %v213
    %v216 = vadd.f32 %v167, %v214
    %v217 = vld [vmem:[%s4] sm:$0x7]
    %v218 = vperm.slane %v217, 0
    %v219 = vadd.f32 %v215, %v218
    %v220 = vadd.f32 %v216, %v218
    %v221 = vadd.f32 %v219, %v220
    %v222 = vrot.slane %v221, 4
    %v223 = vadd.f32 %v221, %v222
    %v224 = vrot.slane %v223, 2
    %v225 = vadd.f32 %v223, %v224
    %v226 = vrot.slane %v225, 1
    %v227 = vadd.f32 %v225, %v226
    %v228 = vmul.f32 %v219, %v219
    %v229 = vmul.f32 %v220, %v220
    %v230 = vadd.f32 %v228, %v229
    %v231 = vrot.slane %v230, 4
    %v232 = vadd.f32 %v230, %v231
    %v233 = vrot.slane %v232, 2
    %v234 = vadd.f32 %v232, %v233
    %v235 = vrot.slane %v234, 1
    %v236 = vadd.f32 %v234, %v235
    %vm237 = vcmask 1040384
    %v238 = vsel %vm237, %v227, %v236
    %239 = vmatpush.msra.mxu0 %v72
    %240 = vmatpush.msra.mxu0 %v71
    %241 = vmatpush.msra.mxu0 %v70
    %242 = vmatpush.msra.mxu0 %v69
    %243 = vmatpush.msra.mxu0 %v68
    %244 = vmatpush.msra.mxu0 %v67
    %245 = vmatpush.msra.mxu0 %v66
    %246 = vmatpush.msra.mxu0 %v65
    %247 = vmatpush.msra.mxu0 %v64
    %248 = vmatpush.msra.mxu0 %v63
    %249 = vmatpush.msra.mxu0 %v62
    %250 = vmatpush.msra.mxu0 %v61
    %251 = vmatpush.msra.mxu0 %v60
    %252 = vmatpush.msra.mxu0 %v59
    %253 = vmatpush.msra.mxu0 %v58
    %254 = vmatpush.msra.mxu0 %v57
    %255 = vmatmul.f32.gmra.mxu0 %v238
    %v256 = vpop.f32.mrf.mxu0
    %v257 = vadd.f32 0.0, %v256
    %258 = vdwg.mxu0
    %v259 = vmul.f32 %v257, %v257
    %v261 = vrot.slane %v259, 7
    %v263 = vsub.f32 %v257, %v261
    %v264 = vmax.f32 %v263, 0.0
    %v265 = vperm.slane %v257, 0
    %v266 = vsub.f32 %v219, %v265
    %v267 = vsub.f32 %v220, %v265
    %v268 = vadd.f32 %v264, 1e-05
    %v269 = vrsqrt.pop %v268
    %v270 = vmul.f32 %v269, %v268
    %v271 = vmul.f32 %v270, %v269
    %v272 = vmul.f32 0.5, %v271
    %v273 = vsub.f32 1.5, %v272
    %v274 = vmul.f32 %v269, %v273
    %vm275 = vweird.f32 %v268
    %vm276 = vweird.f32 %v269
    %vm277 = vmor %vm275, %vm276
    %v278 = vsel %vm277, %v269, %v274
    %v279 = vperm.slane %v278, 1
    %v280 = vmul.f32 %v266, %v279
    %v281 = vmul.f32 %v267, %v279
    %v282 = vperm.slane %v217, 1
    %v283 = vmul.f32 %v280, %v282
    %v284 = vmul.f32 %v281, %v282
    %v285 = vperm.slane %v217, 2
    %v286 = vadd.f32 %v283, %v285
    %v287 = vadd.f32 %v284, %v285
    %v288 = vmax.f32 %v286, 0.0
    %v289 = vmax.f32 %v287, 0.0
    %v290 = vld [vmem:[#allocation2] sm:$0xff]
    %v291 = vld [vmem:[#allocation2 + $0x8] sm:$0xff]
    %v292 = vld [vmem:[#allocation2 + $0x10] sm:$0xff]
    %v293 = vld [vmem:[#allocation2 + $0x18] sm:$0xff]
    %v294 = vld [vmem:[#allocation2 + $0x20] sm:$0xff]
    %v295 = vld [vmem:[#allocation2 + $0x28] sm:$0xff]
    %v296 = vld [vmem:[#allocation2 + $0x30] sm:$0xff]
    %v297 = vld [vmem:[#allocation2 + $0x38] sm:$0xff]
    %v298 = vld [vmem:[#allocation2 + $0x40] sm:$0xff]
    %v299 = vld [vmem:[#allocation2 + $0x48] sm:$0xff]
    %v300 = vld [vmem:[#allocation2 + $0x50] sm:$0xff]
    %v301 = vld [vmem:[#allocation2 + $0x58] sm:$0xff]
    %v302 = vld [vmem:[#allocation2 + $0x60] sm:$0xff]
    %v303 = vld [vmem:[#allocation2 + $0x68] sm:$0xff]
    %v304 = vld [vmem:[#allocation2 + $0x70] sm:$0xff]
    %v305 = vld [vmem:[#allocation2 + $0x78] sm:$0xff]
    %306 = vmatpush.msra.mxu0 %v305
    %307 = vmatpush.msra.mxu0 %v304
    %308 = vmatpush.msra.mxu0 %v303
    %309 = vmatpush.msra.mxu0 %v302
    %310 = vmatpush.msra.mxu0 %v301
    %311 = vmatpush.msra.mxu0 %v300
    %312 = vmatpush.msra.mxu0 %v299
    %313 = vmatpush.msra.mxu0 %v298
    %314 = vmatpush.msra.mxu0 %v297
    %315 = vmatpush.msra.mxu0 %v296
    %316 = vmatpush.msra.mxu0 %v295
    %317 = vmatpush.msra.mxu0 %v294
    %318 = vmatpush.msra.mxu0 %v293
    %319 = vmatpush.msra.mxu0 %v292
    %320 = vmatpush.msra.mxu0 %v291
    %321 = vmatpush.msra.mxu0 %v290
    %322 = vmatmul.f32.gmra.mxu0 %v288
    %v323 = vpop.f32.mrf.mxu0
    %v324 = vadd.f32 0.0, %v323
    %325 = vmatmul.f32.gmra.mxu0 %v289
    %v326 = vpop.f32.mrf.mxu0
    %v327 = vadd.f32 0.0, %v326
    %328 = vdwg.mxu0
    %v329 = vrot.slane %v324, 7
    %v330 = vrot.slane %v327, 7
    %v331 = vsel %vm121, %v329, %v330
    %v332 = vsel %vm121, %v330, %v329
    %v333 = vsel %vm76, 0.0, %v332
    %v334 = vsel %vm77, 0.0, %v331
    %s335 = scalar_lea.vmem [#allocation2], 128
    %v336 = vld [vmem:[%s335] sm:$0xff]
    %v337 = vld [vmem:[%s335 + $0x8] sm:$0xff]
    %v338 = vld [vmem:[%s335 + $0x10] sm:$0xff]
    %v339 = vld [vmem:[%s335 + $0x18] sm:$0xff]
    %v340 = vld [vmem:[%s335 + $0x20] sm:$0xff]
    %v341 = vld [vmem:[%s335 + $0x28] sm:$0xff]
    %v342 = vld [vmem:[%s335 + $0x30] sm:$0xff]
    %v343 = vld [vmem:[%s335 + $0x38] sm:$0xff]
    %v344 = vld [vmem:[%s335 + $0x40] sm:$0xff]
    %v345 = vld [vmem:[%s335 + $0x48] sm:$0xff]
    %v346 = vld [vmem:[%s335 + $0x50] sm:$0xff]
    %v347 = vld [vmem:[%s335 + $0x58] sm:$0xff]
    %v348 = vld [vmem:[%s335 + $0x60] sm:$0xff]
    %v349 = vld [vmem:[%s335 + $0x68] sm:$0xff]
    %v350 = vld [vmem:[%s335 + $0x70] sm:$0xff]
    %v351 = vld [vmem:[%s335 + $0x78] sm:$0xff]
    %352 = vmatpush.msra.mxu0 %v351
    %353 = vmatpush.msra.mxu0 %v350
    %354 = vmatpush.msra.mxu0 %v349
    %355 = vmatpush.msra.mxu0 %v348
    %356 = vmatpush.msra.mxu0 %v347
    %357 = vmatpush.msra.mxu0 %v346
    %358 = vmatpush.msra.mxu0 %v345
    %359 = vmatpush.msra.mxu0 %v344
    %360 = vmatpush.msra.mxu0 %v343
    %361 = vmatpush.msra.mxu0 %v342
    %362 = vmatpush.msra.mxu0 %v341
    %363 = vmatpush.msra.mxu0 %v340
    %364 = vmatpush.msra.mxu0 %v339
    %365 = vmatpush.msra.mxu0 %v338
    %366 = vmatpush.msra.mxu0 %v337
    %367 = vmatpush.msra.mxu0 %v336
    %368 = vmatmul.f32.gmra.mxu0 %v288
    %v369 = vpop.f32.mrf.mxu0
    %v370 = vadd.f32 0.0, %v369
    %371 = vmatmul.f32.gmra.mxu0 %v289
    %v372 = vpop.f32.mrf.mxu0
    %v373 = vadd.f32 0.0, %v372
    %374 = vdwg.mxu0
    %v375 = vadd.f32 %v333, %v370
    %v376 = vadd.f32 %v334, %v373
    %s377 = scalar_lea.vmem [#allocation2], 256
    %v378 = vld [vmem:[%s377] sm:$0xff]
    %v379 = vld [vmem:[%s377 + $0x8] sm:$0xff]
    %v380 = vld [vmem:[%s377 + $0x10] sm:$0xff]
    %v381 = vld [vmem:[%s377 + $0x18] sm:$0xff]
    %v382 = vld [vmem:[%s377 + $0x20] sm:$0xff]
    %v383 = vld [vmem:[%s377 + $0x28] sm:$0xff]
    %v384 = vld [vmem:[%s377 + $0x30] sm:$0xff]
    %v385 = vld [vmem:[%s377 + $0x38] sm:$0xff]
    %v386 = vld [vmem:[%s377 + $0x40] sm:$0xff]
    %v387 = vld [vmem:[%s377 + $0x48] sm:$0xff]
    %v388 = vld [vmem:[%s377 + $0x50] sm:$0xff]
    %v389 = vld [vmem:[%s377 + $0x58] sm:$0xff]
    %v390 = vld [vmem:[%s377 + $0x60] sm:$0xff]
    %v391 = vld [vmem:[%s377 + $0x68] sm:$0xff]
    %v392 = vld [vmem:[%s377 + $0x70] sm:$0xff]
    %v393 = vld [vmem:[%s377 + $0x78] sm:$0xff]
    %394 = vmatpush.msra.mxu0 %v393
    %395 = vmatpush.msra.mxu0 %v392
    %396 = vmatpush.msra.mxu0 %v391
    %397 = vmatpush.msra.mxu0 %v390
    %398 = vmatpush.msra.mxu0 %v389
    %399 = vmatpush.msra.mxu0 %v388
    %400 = vmatpush.msra.mxu0 %v387
    %401 = vmatpush.msra.mxu0 %v386
    %402 = vmatpush.msra.mxu0 %v385
    %403 = vmatpush.msra.mxu0 %v384
    %404 = vmatpush.msra.mxu0 %v383
    %405 = vmatpush.msra.mxu0 %v382
    %406 = vmatpush.msra.mxu0 %v381
    %407 = vmatpush.msra.mxu0 %v380
    %408 = vmatpush.msra.mxu0 %v379
    %409 = vmatpush.msra.mxu0 %v378
    %410 = vmatmul.f32.gmra.mxu0 %v288
    %v411 = vpop.f32.mrf.mxu0
    %v412 = vadd.f32 0.0, %v411
    %413 = vmatmul.f32.gmra.mxu0 %v289
    %v414 = vpop.f32.mrf.mxu0
    %v415 = vadd.f32 0.0, %v414
    %416 = vdwg.mxu0
    %v417 = vrot.slane %v412, 1
    %v418 = vrot.slane %v415, 1
    %v419 = vsel %vm210, %v417, %v418
    %v420 = vsel %vm210, %v418, %v417
    %v421 = vsel %vm78, 0.0, %v419
    %v422 = vsel %vm79, 0.0, %v420
    %v423 = vadd.f32 %v375, %v421
    %v424 = vadd.f32 %v376, %v422
    %v425 = vld [vmem:[%s5] sm:$0x7]
    %v426 = vperm.slane %v425, 0
    %v427 = vadd.f32 %v423, %v426
    %v428 = vadd.f32 %v424, %v426
    %v429 = vadd.f32 %v427, %v428
    %v430 = vrot.slane %v429, 4
    %v431 = vadd.f32 %v429, %v430
    %v432 = vrot.slane %v431, 2
    %v433 = vadd.f32 %v431, %v432
    %v434 = vrot.slane %v433, 1
    %v435 = vadd.f32 %v433, %v434
    %v436 = vmul.f32 %v427, %v427
    %v437 = vmul.f32 %v428, %v428
    %v438 = vadd.f32 %v436, %v437
    %v439 = vrot.slane %v438, 4
    %v440 = vadd.f32 %v438, %v439
    %v441 = vrot.slane %v440, 2
    %v442 = vadd.f32 %v440, %v441
    %v443 = vrot.slane %v442, 1
    %v444 = vadd.f32 %v442, %v443
    %v445 = vsel %vm237, %v435, %v444
    %446 = vmatpush.msra.mxu0 %v72
    %447 = vmatpush.msra.mxu0 %v71
    %448 = vmatpush.msra.mxu0 %v70
    %449 = vmatpush.msra.mxu0 %v69
    %450 = vmatpush.msra.mxu0 %v68
    %451 = vmatpush.msra.mxu0 %v67
    %452 = vmatpush.msra.mxu0 %v66
    %453 = vmatpush.msra.mxu0 %v65
    %454 = vmatpush.msra.mxu0 %v64
    %455 = vmatpush.msra.mxu0 %v63
    %456 = vmatpush.msra.mxu0 %v62
    %457 = vmatpush.msra.mxu0 %v61
    %458 = vmatpush.msra.mxu0 %v60
    %459 = vmatpush.msra.mxu0 %v59
    %460 = vmatpush.msra.mxu0 %v58
    %461 = vmatpush.msra.mxu0 %v57
    %462 = vmatmul.f32.gmra.mxu0 %v445
    %v463 = vpop.f32.mrf.mxu0
    %v464 = vadd.f32 0.0, %v463
    %465 = vdwg.mxu0
    %v466 = vmul.f32 %v464, %v464
    %v468 = vrot.slane %v466, 7
    %v470 = vsub.f32 %v464, %v468
    %v471 = vmax.f32 %v470, 0.0
    %v472 = vperm.slane %v464, 0
    %v473 = vsub.f32 %v427, %v472
    %v474 = vsub.f32 %v428, %v472
    %v475 = vadd.f32 %v471, 1e-05
    %v476 = vrsqrt.pop %v475
    %v477 = vmul.f32 %v476, %v475
    %v478 = vmul.f32 %v477, %v476
    %v479 = vmul.f32 0.5, %v478
    %v480 = vsub.f32 1.5, %v479
    %v481 = vmul.f32 %v476, %v480
    %vm482 = vweird.f32 %v475
    %vm483 = vweird.f32 %v476
    %vm484 = vmor %vm482, %vm483
    %v485 = vsel %vm484, %v476, %v481
    %v486 = vperm.slane %v485, 1
    %v487 = vmul.f32 %v473, %v486
    %v488 = vmul.f32 %v474, %v486
    %v489 = vperm.slane %v425, 1
    %v490 = vmul.f32 %v487, %v489
    %v491 = vmul.f32 %v488, %v489
    %v492 = vperm.slane %v425, 2
    %v493 = vadd.f32 %v490, %v492
    %v494 = vadd.f32 %v491, %v492
    %v495 = vadd.f32 %v55, %v493
    %v496 = vadd.f32 %v56, %v494
    %v497 = vmax.f32 %v495, 0.0
    %v498 = vmax.f32 %v496, 0.0
    %499 = vst [vmem:[%s6] sm:$0xff] %v497
    %500 = vst [vmem:[%s6 + $0x8] sm:$0xff] %v498
    // Predicated region
    $region34: #{resblock_pallas.1} parent=1 // pred_check
      _
    $region35: #{resblock_pallas.1} parent=1 // pred_check_branch
      %502 = sbr.rel (0) target = $region37
    $region36: #{resblock_pallas.1} parent=1 // pred_region
      _
    $region37: #{resblock_pallas.1} parent=1 // pred_fallthru
      _
    // Predicated region
    $region38: #{resblock_pallas.1} parent=1 // pred_check
      _
    $region39: #{resblock_pallas.1} parent=1 // pred_check_branch
      %504 = sbr.rel (0) target = $region41
    $region40: #{resblock_pallas.1} parent=1 // pred_region
      _
    $region41: #{resblock_pallas.1} parent=1 // pred_fallthru
      _
    %505 = vsyncpa [#allocation3], 1
    %506 = vsyncpa [#allocation5], 1

</llo_original>
